<compile_context>
chip_gen: v6e
topology: v6e:2x2x1
jax: 0.10.0
libtpu: 0.0.40
codegen_flags: <defaults>
</compile_context>

<pallas_src>
import jax
import jax.numpy as jnp
from jax.experimental import pallas as pl
from jax.experimental.pallas import tpu as pltpu

# ----------------------------- synthetic config -----------------------------
B = 8               # batch of <column, question> pairs (multiple of 8 sublanes)
S = 16              # sequence length
H = 32              # bert hidden size
VOCAB = 64
AGG_NUM = 6
OP_NUM = 4
MAX_VALUE_NUM = 3
VP1 = MAX_VALUE_NUM + 1
DROP_RATE = 0.0     # nn.Dropout(0.0) == identity

# Fused pooled-head layout (concatenated along the output feature dim):
# [6x2 sims | agg | op | value_num | relationship]
POOLED_SIZES = [2, 2, 2, 2, 2, 2, AGG_NUM, OP_NUM, VP1, 2]
POOLED_TOTAL = sum(POOLED_SIZES)            # 28
TOKEN_TOTAL = 2 * VP1                       # 8  (value_start ++ value_end)
SIM_TOTAL = 12                              # six contiguous 2-way log-sigmoid heads

_OFFSETS = []
_o = 0
for _sz in POOLED_SIZES:
    _OFFSETS.append(_o)
    _o += _sz
(O_SFS, O_SFW, O_SFA, O_SSS, O_SSW, O_SSA,
 O_AGG, O_OP, O_VNUM, O_REL) = _OFFSETS

# ------------------- packed parameter slab (single input DMA) -----------------
# Every block starts at a multiple of 8 rows (sublanes); lane width = 32.
P_COLS = max(H, POOLED_TOTAL, TOKEN_TOTAL)   # 32
ROW_POOLER_W = 0
ROW_POOLER_B = ROW_POOLER_W + H              # 32
ROW_W_POOLED = ROW_POOLER_B + 8              # 40
ROW_B_POOLED = ROW_W_POOLED + H              # 72
ROW_W_TOKEN = ROW_B_POOLED + 8               # 80
ROW_B_TOKEN = ROW_W_TOKEN + H                # 112
P_ROWS = ROW_B_TOKEN + 8                     # 120


# ------------------------------ kernel helpers -------------------------------
def _log_softmax(x, axis):
    m = jnp.max(x, axis=axis, keepdims=True)
    s = x - m
    return s - jnp.log(jnp.sum(jnp.exp(s), axis=axis, keepdims=True))


def _log_sigmoid(x):
    # log(sigmoid(x)) = -log(1 + exp(-x)), numerically stable.
    return -jnp.logaddexp(jnp.float32(0.0), -x)


# --------------------------------- kernel ------------------------------------
def hydra_heads_kernel(x_ref, mask_ref, params_ref, pooled_out_ref, token_out_ref):
    # ---- static slices of the packed parameter slab (ONE input DMA) ----
    pooler_w = params_ref[ROW_POOLER_W:ROW_POOLER_W + H, :H]             # (H, H)
    pooler_b = params_ref[ROW_POOLER_B:ROW_POOLER_B + 1, :H]             # (1, H)
    w_pooled = params_ref[ROW_W_POOLED:ROW_W_POOLED + H, :POOLED_TOTAL]  # (H, 28)
    b_pooled = params_ref[ROW_B_POOLED:ROW_B_POOLED + 1, :POOLED_TOTAL]  # (1, 28)
    w_token = params_ref[ROW_W_TOKEN:ROW_W_TOKEN + H, :TOKEN_TOTAL]      # (H, 8)
    b_token = params_ref[ROW_B_TOKEN:ROW_B_TOKEN + 1, :TOKEN_TOTAL]      # (1, 8)

    x = x_ref[...]                                   # (B, S, H) encoder output
    tokens = x.reshape(B * S, H)                     # leading-dim merge (layout-free)

    # ---- BERT-style tanh pooler, fused in-kernel ----
    # CLS rows are picked with a one-hot selector matmul (MXU, free slot) instead of
    # a middle-dim slice + squeeze (avoids a cross-vreg sublane gather / relayout).
    row = jax.lax.broadcasted_iota(jnp.int32, (B, B * S), 0)
    col = jax.lax.broadcasted_iota(jnp.int32, (B, B * S), 1)
    cls_sel = (col == row * S).astype(jnp.float32)                      # (B, B*S)
    cls = jnp.dot(cls_sel, tokens, preferred_element_type=jnp.float32)  # (B, H)
    pooled = jnp.tanh(
        jnp.dot(cls, pooler_w, preferred_element_type=jnp.float32) + pooler_b)

    # ---- 10 pooled heads: one fused (H, 28) matmul ----
    pooled_logits = (jnp.dot(pooled, w_pooled, preferred_element_type=jnp.float32)
                     + b_pooled)                                        # (B, 28)

    # Build the whole activated (B, 28) slab in registers, then ONE store:
    #   lanes [0, 12)   six 2-way sim heads          -> log-sigmoid
    #   lanes [12, 28)  agg | op | value_num | rel   -> per-segment log-softmax
    lane = jax.lax.broadcasted_iota(jnp.int32, (B, POOLED_TOTAL), 1)
    pooled_act = _log_sigmoid(pooled_logits)
    for off, size in ((O_AGG, AGG_NUM), (O_OP, OP_NUM), (O_VNUM, VP1), (O_REL, 2)):
        in_seg = (lane >= off) & (lane < off + size)
        m = jnp.max(jnp.where(in_seg, pooled_logits, jnp.float32(-1e30)),
                    axis=1, keepdims=True)
        e = jnp.where(in_seg, jnp.exp(pooled_logits - m), jnp.float32(0.0))
        lse = m + jnp.log(jnp.sum(e, axis=1, keepdims=True))
        pooled_act = jnp.where(in_seg, pooled_logits - lse, pooled_act)
    pooled_out_ref[...] = pooled_act

    # ---- 2 token heads (value_start ++ value_end): one fused (H, 8) matmul ----
    tok = (jnp.dot(tokens, w_token, preferred_element_type=jnp.float32)
           + b_token).reshape(B, S, TOKEN_TOTAL)                        # (B, S, 8)

    # Span masking: channel 0 of each head untouched; other channels -> -1e6 wherever
    # input_mask == 0.  input_mask is strictly 0/1, so this single select matches the
    # torch x*mask - 1e6*(1-mask) form exactly, with fewer VPU ops per vreg.
    mask3 = mask_ref[...][:, :, None]                                   # (B, S, 1)
    ch = jax.lax.broadcasted_iota(jnp.int32, (B, S, TOKEN_TOTAL), 2)
    keep = ((ch == 0) | (ch == VP1)).astype(jnp.float32)
    tok = jnp.where(jnp.maximum(keep, mask3) > jnp.float32(0.5),
                    tok, jnp.float32(-1000000.0))

    # Single log-softmax over the sequence axis for both heads at once
    # (torch: .log_softmax(1) on [B, S, V+1]).
    token_out_ref[...] = _log_softmax(tok, axis=1)


# ------------------------------ pallas wrapper -------------------------------
def _make_heads_call():
    f32 = jnp.float32
    vmem = pl.BlockSpec(memory_space=pltpu.MemorySpace.VMEM)
    return pl.pallas_call(
        hydra_heads_kernel,
        out_shape=(
            jax.ShapeDtypeStruct((B, POOLED_TOTAL), f32),      # fused pooled heads
            jax.ShapeDtypeStruct((B, S, TOKEN_TOTAL), f32),    # fused token heads
        ),
        in_specs=[vmem, vmem, vmem],
        out_specs=(vmem, vmem),
    )


_HEADS_CALL = _make_heads_call()


# --------------------------- parameter construction --------------------------
def pack_params(params):
    """Pack all static head/pooler parameters into one (120, 32) VMEM slab."""
    def pad_block(a, rows, cols):
        return jnp.pad(a, ((0, rows - a.shape[0]), (0, cols - a.shape[1])))

    packed = jnp.concatenate([
        pad_block(params["pooler_w"], H, P_COLS),          # rows [  0,  32)
        pad_block(params["pooler_b"][None, :], 8, P_COLS), # rows [ 32,  40)
        pad_block(params["w_pooled"], H, P_COLS),          # rows [ 40,  72)
        pad_block(params["b_pooled"], 8, P_COLS),          # rows [ 72,  80)
        pad_block(params["w_token"], H, P_COLS),           # rows [ 80, 112)
        pad_block(params["b_token"], 8, P_COLS),           # rows [112, 120)
    ], axis=0)
    assert packed.shape == (P_ROWS, P_COLS)
    return packed


def init_params(key):
    ks = jax.random.split(key, 9)
    scale = jnp.float32(0.02)
    params = {
        # synthetic stand-in for the base encoder (plain-JAX glue)
        "word_emb": jax.random.normal(ks[0], (VOCAB, H), jnp.float32) * scale,
        "pos_emb": jax.random.normal(ks[1], (S, H), jnp.float32) * scale,
        "seg_emb": jax.random.normal(ks[2], (2, H), jnp.float32) * scale,
        # BERT-style tanh pooler (runs inside the Pallas kernel)
        "pooler_w": jax.random.normal(ks[3], (H, H), jnp.float32) * scale,
        "pooler_b": jax.random.normal(ks[4], (H,), jnp.float32) * scale,
        # 10 pooled heads fused column-wise: [6x2 sims | agg | op | value_num | rel]
        "w_pooled": jax.random.normal(ks[5], (H, POOLED_TOTAL), jnp.float32) * scale,
        "b_pooled": jax.random.normal(ks[6], (1, POOLED_TOTAL), jnp.float32) * scale,
        # 2 token heads fused column-wise: [value_start | value_end]
        "w_token": jax.random.normal(ks[7], (H, TOKEN_TOTAL), jnp.float32) * scale,
        "b_token": jax.random.normal(ks[8], (1, TOKEN_TOTAL), jnp.float32) * scale,
    }
    params["packed"] = pack_params(params)
    return params


# ------------------------------- full forward --------------------------------
def synthetic_base_model(params, input_ids, input_mask, segment_ids):
    # TODO(synk): pretrained BERT encoder is an external dependency; replaced by a
    # deterministic synthetic embedding + tanh encoder (plain-JAX glue). Its tanh
    # pooler over the [CLS] position runs inside the Pallas kernel.
    del input_mask  # attention is not modelled in the synthetic encoder
    emb = (params["word_emb"][input_ids]
           + params["pos_emb"][None, :, :]
           + params["seg_emb"][segment_ids])
    return jnp.tanh(emb)                                               # (B, S, H)


@jax.jit
def _forward_jit(params, input_ids, input_mask, segment_ids):
    bert_output = synthetic_base_model(params, input_ids, input_mask, segment_ids)
    # nn.Dropout(drop_rate=0.0) is the identity.
    value_span_mask = input_mask.astype(bert_output.dtype)             # (B, S)
    return _HEADS_CALL(bert_output, value_span_mask, params["packed"])


def hydra_column_net_forward(params, input_ids, input_mask, segment_ids):
    pooled_act, token_act = _forward_jit(params, input_ids, input_mask, segment_ids)
    return {
        "sql_first_select_sim": pooled_act[:, O_SFS:O_SFS + 2],
        "sql_first_where_sim": pooled_act[:, O_SFW:O_SFW + 2],
        "sql_first_all_sim": pooled_act[:, O_SFA:O_SFA + 2],
        "sql_sec_select_sim": pooled_act[:, O_SSS:O_SSS + 2],
        "sql_sec_where_sim": pooled_act[:, O_SSW:O_SSW + 2],
        "sql_sec_all_sim": pooled_act[:, O_SSA:O_SSA + 2],
        "agg": pooled_act[:, O_AGG:O_AGG + AGG_NUM],
        "op": pooled_act[:, O_OP:O_OP + OP_NUM],
        "value_num": pooled_act[:, O_VNUM:O_VNUM + VP1],
        "value_start": token_act[:, :, :VP1],
        "value_end": token_act[:, :, VP1:],
        "relationship": pooled_act[:, O_REL:O_REL + 2],
        "loss": None,  # TODO(synk): training-loss branch (labels given) not implemented
    }


# --------------------------- pure-JAX reference ------------------------------
def reference_forward(params, input_ids, input_mask, segment_ids):
    bert_output = synthetic_base_model(params, input_ids, input_mask, segment_ids)
    cls = bert_output[:, 0, :]
    pooled_output = jnp.tanh(cls @ params["pooler_w"] + params["pooler_b"])
    pooled_logits = pooled_output @ params["w_pooled"] + params["b_pooled"]
    tok = (jnp.einsum("bsh,ht->bst", bert_output, params["w_token"])
           + params["b_token"])
    m = input_mask.astype(jnp.float32)[:, :, None]
    ch = jnp.arange(TOKEN_TOTAL)[None, None, :]
    keep = (ch == 0) | (ch == VP1)
    # torch multiply form (identical to the kernel's select for 0/1 masks)
    tok = jnp.where(keep, tok, tok * m - 1000000.0 * (1.0 - m))
    ls, lsm = jax.nn.log_sigmoid, jax.nn.log_softmax
    return {
        "sql_first_select_sim": ls(pooled_logits[:, O_SFS:O_SFS + 2]),
        "sql_first_where_sim": ls(pooled_logits[:, O_SFW:O_SFW + 2]),
        "sql_first_all_sim": ls(pooled_logits[:, O_SFA:O_SFA + 2]),
        "sql_sec_select_sim": ls(pooled_logits[:, O_SSS:O_SSS + 2]),
        "sql_sec_where_sim": ls(pooled_logits[:, O_SSW:O_SSW + 2]),
        "sql_sec_all_sim": ls(pooled_logits[:, O_SSA:O_SSA + 2]),
        "agg": lsm(pooled_logits[:, O_AGG:O_AGG + AGG_NUM], axis=1),
        "op": lsm(pooled_logits[:, O_OP:O_OP + OP_NUM], axis=1),
        "value_num": lsm(pooled_logits[:, O_VNUM:O_VNUM + VP1], axis=1),
        "value_start": lsm(tok[..., :VP1], axis=1),
        "value_end": lsm(tok[..., VP1:], axis=1),
        "relationship": lsm(pooled_logits[:, O_REL:O_REL + 2], axis=1),
    }


# ----------------------------------- main -------------------------------------
if __name__ == "__main__":
    key = jax.random.PRNGKey(0)
    k_param, k_ids = jax.random.split(key)

    params = init_params(k_param)

    input_ids = jax.random.randint(k_ids, (B, S), 0, VOCAB, dtype=jnp.int32)
    # segment ids: first half (column) = 0, second half (question) = 1
    segment_ids = (jnp.arange(S)[None, :] >= (S // 2)).astype(jnp.int32)
    segment_ids = jnp.broadcast_to(segment_ids, (B, S))
    # per-example valid lengths (some padding tokens at the end)
    lens = S - (jnp.arange(B, dtype=jnp.int32) % 6)
    input_mask = (jnp.arange(S)[None, :] < lens[:, None]).astype(jnp.int32)

    out = hydra_column_net_forward(params, input_ids, input_mask, segment_ids)
    jax.block_until_ready([v for v in out.values() if v is not None])

    # shape sanity
    assert out["value_start"].shape == (B, S, VP1)
    assert out["value_end"].shape == (B, S, VP1)
    assert out["agg"].shape == (B, AGG_NUM)
    assert out["op"].shape == (B, OP_NUM)
    assert out["value_num"].shape == (B, VP1)
    assert out["relationship"].shape == (B, 2)
    assert out["sql_first_select_sim"].shape == (B, 2)
    assert bool(jnp.all(jnp.isfinite(out["value_start"])))

    # compare ALL 12 heads against the pure-JAX reference
    ref = reference_forward(params, input_ids, input_mask, segment_ids)
    for name, rv in ref.items():
        ov = out[name]
        assert ov.shape == rv.shape, f"{name}: shape {ov.shape} vs {rv.shape}"
        diff = float(jnp.max(jnp.abs(ov - rv)))
        assert diff < 5e-3, f"{name}: max abs diff {diff}"

    # log-softmax over the sequence axis sums to 1 in prob space
    psum_s = jnp.sum(jnp.exp(out["value_start"]), axis=1)
    psum_e = jnp.sum(jnp.exp(out["value_end"]), axis=1)
    assert bool(jnp.all(jnp.abs(psum_s - 1.0) < 1e-3))
    assert bool(jnp.all(jnp.abs(psum_e - 1.0) < 1e-3))

    print("KERNEL_OK")
</pallas_src>

<mosaic_0001>
module attributes {stable_mosaic.version = 11 : i64} {
  func.func @hydra_heads_kernel(%arg0: memref<8x16x32xf32, #tpu.memory_space<vmem>>, %arg1: memref<8x16xf32, #tpu.memory_space<vmem>>, %arg2: memref<120x32xf32, #tpu.memory_space<vmem>>, %arg3: memref<8x28xf32, #tpu.memory_space<vmem>>, %arg4: memref<8x16x8xf32, #tpu.memory_space<vmem>>) attributes {dimension_semantics = [], scalar_prefetch = 0 : i64, scratch_operands = 0 : i64, tpu.core_type = #tpu.core_type<tc>} {
    %c0 = arith.constant 0 : index
    %c0_0 = arith.constant 0 : index
    %0 = vector.load %arg2[%c0, %c0_0] : memref<120x32xf32, #tpu.memory_space<vmem>>, vector<32x32xf32>
    %c32 = arith.constant 32 : index
    %c0_1 = arith.constant 0 : index
    %1 = vector.load %arg2[%c32, %c0_1] : memref<120x32xf32, #tpu.memory_space<vmem>>, vector<1x32xf32>
    %c40 = arith.constant 40 : index
    %c0_2 = arith.constant 0 : index
    %2 = vector.load %arg2[%c40, %c0_2] : memref<120x32xf32, #tpu.memory_space<vmem>>, vector<32x28xf32>
    %c72 = arith.constant 72 : index
    %c0_3 = arith.constant 0 : index
    %3 = vector.load %arg2[%c72, %c0_3] : memref<120x32xf32, #tpu.memory_space<vmem>>, vector<1x28xf32>
    %c80 = arith.constant 80 : index
    %c0_4 = arith.constant 0 : index
    %4 = vector.load %arg2[%c80, %c0_4] : memref<120x32xf32, #tpu.memory_space<vmem>>, vector<32x8xf32>
    %c112 = arith.constant 112 : index
    %c0_5 = arith.constant 0 : index
    %5 = vector.load %arg2[%c112, %c0_5] : memref<120x32xf32, #tpu.memory_space<vmem>>, vector<1x8xf32>
    %c0_6 = arith.constant 0 : index
    %c0_7 = arith.constant 0 : index
    %c0_8 = arith.constant 0 : index
    %6 = vector.load %arg0[%c0_6, %c0_7, %c0_8] : memref<8x16x32xf32, #tpu.memory_space<vmem>>, vector<8x16x32xf32>
    %7 = vector.shape_cast %6 : vector<8x16x32xf32> to vector<128x32xf32>
    %8 = tpu.iota {dimensions = array<i32: 0>} : vector<8x128xi32>
    %9 = tpu.iota {dimensions = array<i32: 1>} : vector<8x128xi32>
    %c16_i32 = arith.constant 16 : i32
    %10 = vector.broadcast %c16_i32 : i32 to vector<8x128xi32>
    %11 = arith.muli %8, %10 : vector<8x128xi32>
    %12 = arith.cmpi eq, %9, %11 : vector<8x128xi32>
    %13 = arith.extui %12 : vector<8x128xi1> to vector<8x128xi32>
    %14 = arith.sitofp %13 : vector<8x128xi32> to vector<8x128xf32>
    %cst = arith.constant dense<0.000000e+00> : vector<8x32xf32>
    %15 = tpu.matmul %14, %7, %cst {dimension_numbers = #tpu.dot_dimension_numbers<[1], [0], [0], [1], [0, 0, 1, 1], [], []>} : vector<8x128xf32>, vector<128x32xf32>, vector<8x32xf32> -> vector<8x32xf32>
    %cst_9 = arith.constant dense<0.000000e+00> : vector<8x32xf32>
    %16 = tpu.matmul %15, %0, %cst_9 {dimension_numbers = #tpu.dot_dimension_numbers<[1], [0], [0], [1], [0, 0, 1, 1], [], []>} : vector<8x32xf32>, vector<32x32xf32>, vector<8x32xf32> -> vector<8x32xf32>
    %17 = vector.broadcast %1 : vector<1x32xf32> to vector<8x32xf32>
    %18 = arith.addf %16, %17 : vector<8x32xf32>
    %19 = math.tanh %18 : vector<8x32xf32>
    %cst_10 = arith.constant dense<0.000000e+00> : vector<8x28xf32>
    %20 = tpu.matmul %19, %2, %cst_10 {dimension_numbers = #tpu.dot_dimension_numbers<[1], [0], [0], [1], [0, 0, 1, 1], [], []>} : vector<8x32xf32>, vector<32x28xf32>, vector<8x28xf32> -> vector<8x28xf32>
    %21 = vector.broadcast %3 : vector<1x28xf32> to vector<8x28xf32>
    %22 = arith.addf %20, %21 : vector<8x28xf32>
    %23 = tpu.iota {dimensions = array<i32: 1>} : vector<8x28xi32>
    %cst_11 = arith.constant 0.000000e+00 : f32
    %24 = vector.broadcast %cst_11 : f32 to vector<8x28xf32>
    %25 = arith.subf %24, %22 : vector<8x28xf32>
    %cst_12 = arith.constant 0.000000e+00 : f32
    %26 = vector.broadcast %cst_12 : f32 to vector<8x28xf32>
    %27 = arith.maximumf %26, %25 : vector<8x28xf32>
    %28 = vector.broadcast %cst_12 : f32 to vector<8x28xf32>
    %29 = arith.subf %28, %25 : vector<8x28xf32>
    %30 = arith.cmpf one, %29, %29 : vector<8x28xf32>
    %31 = vector.broadcast %cst_12 : f32 to vector<8x28xf32>
    %32 = arith.addf %31, %25 : vector<8x28xf32>
    %33 = math.absf %29 : vector<8x28xf32>
    %cst_13 = arith.constant 0.000000e+00 : f32
    %34 = vector.broadcast %cst_13 : f32 to vector<8x28xf32>
    %35 = arith.subf %34, %33 : vector<8x28xf32>
    %36 = math.exp %35 : vector<8x28xf32>
    %37 = math.log1p %36 : vector<8x28xf32>
    %38 = arith.addf %27, %37 : vector<8x28xf32>
    %39 = arith.select %30, %32, %38 : vector<8x28xi1>, vector<8x28xf32>
    %cst_14 = arith.constant 0.000000e+00 : f32
    %40 = vector.broadcast %cst_14 : f32 to vector<8x28xf32>
    %41 = arith.subf %40, %39 : vector<8x28xf32>
    %c12_i32 = arith.constant 12 : i32
    %42 = vector.broadcast %c12_i32 : i32 to vector<8x28xi32>
    %43 = arith.cmpi sge, %23, %42 : vector<8x28xi32>
    %c18_i32 = arith.constant 18 : i32
    %44 = vector.broadcast %c18_i32 : i32 to vector<8x28xi32>
    %45 = arith.cmpi slt, %23, %44 : vector<8x28xi32>
    %46 = arith.andi %43, %45 : vector<8x28xi1>
    %cst_15 = arith.constant -1.000000e+30 : f32
    %47 = vector.broadcast %cst_15 : f32 to vector<8x28xf32>
    %48 = arith.select %46, %22, %47 : vector<8x28xi1>, vector<8x28xf32>
    %cst_16 = arith.constant dense<0xFF800000> : vector<8xf32>
    %49 = vector.multi_reduction <maximumf>, %48, %cst_16 [1] : vector<8x28xf32> to vector<8xf32>
    %50 = vector.shape_cast %49 : vector<8xf32> to vector<8x1xf32>
    %51 = vector.broadcast %50 : vector<8x1xf32> to vector<8x28xf32>
    %52 = arith.subf %22, %51 : vector<8x28xf32>
    %53 = math.exp %52 : vector<8x28xf32>
    %cst_17 = arith.constant 0.000000e+00 : f32
    %54 = vector.broadcast %cst_17 : f32 to vector<8x28xf32>
    %55 = arith.select %46, %53, %54 : vector<8x28xi1>, vector<8x28xf32>
    %cst_18 = arith.constant dense<0.000000e+00> : vector<8xf32>
    %56 = vector.multi_reduction <add>, %55, %cst_18 [1] : vector<8x28xf32> to vector<8xf32>
    %57 = vector.shape_cast %56 : vector<8xf32> to vector<8x1xf32>
    %58 = math.log %57 : vector<8x1xf32>
    %59 = arith.addf %50, %58 : vector<8x1xf32>
    %60 = vector.broadcast %59 : vector<8x1xf32> to vector<8x28xf32>
    %61 = arith.subf %22, %60 : vector<8x28xf32>
    %62 = arith.select %46, %61, %41 : vector<8x28xi1>, vector<8x28xf32>
    %c18_i32_19 = arith.constant 18 : i32
    %63 = vector.broadcast %c18_i32_19 : i32 to vector<8x28xi32>
    %64 = arith.cmpi sge, %23, %63 : vector<8x28xi32>
    %c22_i32 = arith.constant 22 : i32
    %65 = vector.broadcast %c22_i32 : i32 to vector<8x28xi32>
    %66 = arith.cmpi slt, %23, %65 : vector<8x28xi32>
    %67 = arith.andi %64, %66 : vector<8x28xi1>
    %cst_20 = arith.constant -1.000000e+30 : f32
    %68 = vector.broadcast %cst_20 : f32 to vector<8x28xf32>
    %69 = arith.select %67, %22, %68 : vector<8x28xi1>, vector<8x28xf32>
    %cst_21 = arith.constant dense<0xFF800000> : vector<8xf32>
    %70 = vector.multi_reduction <maximumf>, %69, %cst_21 [1] : vector<8x28xf32> to vector<8xf32>
    %71 = vector.shape_cast %70 : vector<8xf32> to vector<8x1xf32>
    %72 = vector.broadcast %71 : vector<8x1xf32> to vector<8x28xf32>
    %73 = arith.subf %22, %72 : vector<8x28xf32>
    %74 = math.exp %73 : vector<8x28xf32>
    %cst_22 = arith.constant 0.000000e+00 : f32
    %75 = vector.broadcast %cst_22 : f32 to vector<8x28xf32>
    %76 = arith.select %67, %74, %75 : vector<8x28xi1>, vector<8x28xf32>
    %cst_23 = arith.constant dense<0.000000e+00> : vector<8xf32>
    %77 = vector.multi_reduction <add>, %76, %cst_23 [1] : vector<8x28xf32> to vector<8xf32>
    %78 = vector.shape_cast %77 : vector<8xf32> to vector<8x1xf32>
    %79 = math.log %78 : vector<8x1xf32>
    %80 = arith.addf %71, %79 : vector<8x1xf32>
    %81 = vector.broadcast %80 : vector<8x1xf32> to vector<8x28xf32>
    %82 = arith.subf %22, %81 : vector<8x28xf32>
    %83 = arith.select %67, %82, %62 : vector<8x28xi1>, vector<8x28xf32>
    %c22_i32_24 = arith.constant 22 : i32
    %84 = vector.broadcast %c22_i32_24 : i32 to vector<8x28xi32>
    %85 = arith.cmpi sge, %23, %84 : vector<8x28xi32>
    %c26_i32 = arith.constant 26 : i32
    %86 = vector.broadcast %c26_i32 : i32 to vector<8x28xi32>
    %87 = arith.cmpi slt, %23, %86 : vector<8x28xi32>
    %88 = arith.andi %85, %87 : vector<8x28xi1>
    %cst_25 = arith.constant -1.000000e+30 : f32
    %89 = vector.broadcast %cst_25 : f32 to vector<8x28xf32>
    %90 = arith.select %88, %22, %89 : vector<8x28xi1>, vector<8x28xf32>
    %cst_26 = arith.constant dense<0xFF800000> : vector<8xf32>
    %91 = vector.multi_reduction <maximumf>, %90, %cst_26 [1] : vector<8x28xf32> to vector<8xf32>
    %92 = vector.shape_cast %91 : vector<8xf32> to vector<8x1xf32>
    %93 = vector.broadcast %92 : vector<8x1xf32> to vector<8x28xf32>
    %94 = arith.subf %22, %93 : vector<8x28xf32>
    %95 = math.exp %94 : vector<8x28xf32>
    %cst_27 = arith.constant 0.000000e+00 : f32
    %96 = vector.broadcast %cst_27 : f32 to vector<8x28xf32>
    %97 = arith.select %88, %95, %96 : vector<8x28xi1>, vector<8x28xf32>
    %cst_28 = arith.constant dense<0.000000e+00> : vector<8xf32>
    %98 = vector.multi_reduction <add>, %97, %cst_28 [1] : vector<8x28xf32> to vector<8xf32>
    %99 = vector.shape_cast %98 : vector<8xf32> to vector<8x1xf32>
    %100 = math.log %99 : vector<8x1xf32>
    %101 = arith.addf %92, %100 : vector<8x1xf32>
    %102 = vector.broadcast %101 : vector<8x1xf32> to vector<8x28xf32>
    %103 = arith.subf %22, %102 : vector<8x28xf32>
    %104 = arith.select %88, %103, %83 : vector<8x28xi1>, vector<8x28xf32>
    %c26_i32_29 = arith.constant 26 : i32
    %105 = vector.broadcast %c26_i32_29 : i32 to vector<8x28xi32>
    %106 = arith.cmpi sge, %23, %105 : vector<8x28xi32>
    %c28_i32 = arith.constant 28 : i32
    %107 = vector.broadcast %c28_i32 : i32 to vector<8x28xi32>
    %108 = arith.cmpi slt, %23, %107 : vector<8x28xi32>
    %109 = arith.andi %106, %108 : vector<8x28xi1>
    %cst_30 = arith.constant -1.000000e+30 : f32
    %110 = vector.broadcast %cst_30 : f32 to vector<8x28xf32>
    %111 = arith.select %109, %22, %110 : vector<8x28xi1>, vector<8x28xf32>
    %cst_31 = arith.constant dense<0xFF800000> : vector<8xf32>
    %112 = vector.multi_reduction <maximumf>, %111, %cst_31 [1] : vector<8x28xf32> to vector<8xf32>
    %113 = vector.shape_cast %112 : vector<8xf32> to vector<8x1xf32>
    %114 = vector.broadcast %113 : vector<8x1xf32> to vector<8x28xf32>
    %115 = arith.subf %22, %114 : vector<8x28xf32>
    %116 = math.exp %115 : vector<8x28xf32>
    %cst_32 = arith.constant 0.000000e+00 : f32
    %117 = vector.broadcast %cst_32 : f32 to vector<8x28xf32>
    %118 = arith.select %109, %116, %117 : vector<8x28xi1>, vector<8x28xf32>
    %cst_33 = arith.constant dense<0.000000e+00> : vector<8xf32>
    %119 = vector.multi_reduction <add>, %118, %cst_33 [1] : vector<8x28xf32> to vector<8xf32>
    %120 = vector.shape_cast %119 : vector<8xf32> to vector<8x1xf32>
    %121 = math.log %120 : vector<8x1xf32>
    %122 = arith.addf %113, %121 : vector<8x1xf32>
    %123 = vector.broadcast %122 : vector<8x1xf32> to vector<8x28xf32>
    %124 = arith.subf %22, %123 : vector<8x28xf32>
    %125 = arith.select %109, %124, %104 : vector<8x28xi1>, vector<8x28xf32>
    %c0_34 = arith.constant 0 : index
    %c0_35 = arith.constant 0 : index
    %126 = vector.load %arg3[%c0_34, %c0_35] : memref<8x28xf32, #tpu.memory_space<vmem>>, vector<8x28xf32>
    tpu.vector_store %arg3[%c0_34, %c0_35], %125 {strides = array<i32>} : memref<8x28xf32, #tpu.memory_space<vmem>>, vector<8x28xf32>,
    %cst_36 = arith.constant dense<0.000000e+00> : vector<128x8xf32>
    %127 = tpu.matmul %7, %4, %cst_36 {dimension_numbers = #tpu.dot_dimension_numbers<[1], [0], [0], [1], [0, 0, 1, 1], [], []>} : vector<128x32xf32>, vector<32x8xf32>, vector<128x8xf32> -> vector<128x8xf32>
    %128 = vector.broadcast %5 : vector<1x8xf32> to vector<128x8xf32>
    %129 = arith.addf %127, %128 : vector<128x8xf32>
    %130 = vector.shape_cast %129 : vector<128x8xf32> to vector<8x16x8xf32>
    %c0_37 = arith.constant 0 : index
    %c0_38 = arith.constant 0 : index
    %131 = vector.load %arg1[%c0_37, %c0_38] : memref<8x16xf32, #tpu.memory_space<vmem>>, vector<8x16xf32>
    %132 = vector.shape_cast %131 : vector<8x16xf32> to vector<8x16x1xf32>
    %133 = tpu.iota {dimensions = array<i32: 2>} : vector<8x16x8xi32>
    %c0_i32 = arith.constant 0 : i32
    %134 = vector.broadcast %c0_i32 : i32 to vector<8x16x8xi32>
    %135 = arith.cmpi eq, %133, %134 : vector<8x16x8xi32>
    %c4_i32 = arith.constant 4 : i32
    %136 = vector.broadcast %c4_i32 : i32 to vector<8x16x8xi32>
    %137 = arith.cmpi eq, %133, %136 : vector<8x16x8xi32>
    %138 = arith.ori %135, %137 : vector<8x16x8xi1>
    %139 = arith.extui %138 : vector<8x16x8xi1> to vector<8x16x8xi32>
    %140 = arith.sitofp %139 : vector<8x16x8xi32> to vector<8x16x8xf32>
    %141 = vector.broadcast %132 : vector<8x16x1xf32> to vector<8x16x8xf32>
    %142 = arith.maximumf %140, %141 : vector<8x16x8xf32>
    %cst_39 = arith.constant 5.000000e-01 : f32
    %143 = vector.broadcast %cst_39 : f32 to vector<8x16x8xf32>
    %144 = arith.cmpf ogt, %142, %143 : vector<8x16x8xf32>
    %cst_40 = arith.constant -1.000000e+06 : f32
    %145 = vector.broadcast %cst_40 : f32 to vector<8x16x8xf32>
    %146 = arith.select %144, %130, %145 : vector<8x16x8xi1>, vector<8x16x8xf32>
    %cst_41 = arith.constant dense<0xFF800000> : vector<8x8xf32>
    %147 = vector.multi_reduction <maximumf>, %146, %cst_41 [1] : vector<8x16x8xf32> to vector<8x8xf32>
    %148 = vector.shape_cast %147 : vector<8x8xf32> to vector<8x1x8xf32>
    %149 = vector.broadcast %148 : vector<8x1x8xf32> to vector<8x16x8xf32>
    %150 = arith.subf %146, %149 : vector<8x16x8xf32>
    %151 = math.exp %150 : vector<8x16x8xf32>
    %cst_42 = arith.constant dense<0.000000e+00> : vector<8x8xf32>
    %152 = vector.multi_reduction <add>, %151, %cst_42 [1] : vector<8x16x8xf32> to vector<8x8xf32>
    %153 = vector.shape_cast %152 : vector<8x8xf32> to vector<8x1x8xf32>
    %154 = math.log %153 : vector<8x1x8xf32>
    %155 = vector.broadcast %154 : vector<8x1x8xf32> to vector<8x16x8xf32>
    %156 = arith.subf %150, %155 : vector<8x16x8xf32>
    %c0_43 = arith.constant 0 : index
    %c0_44 = arith.constant 0 : index
    %c0_45 = arith.constant 0 : index
    %157 = vector.load %arg4[%c0_43, %c0_44, %c0_45] : memref<8x16x8xf32, #tpu.memory_space<vmem>>, vector<8x16x8xf32>
    tpu.vector_store %arg4[%c0_43, %c0_44, %c0_45], %156 {strides = array<i32>} : memref<8x16x8xf32, #tpu.memory_space<vmem>>, vector<8x16x8xf32>,
    return
  }
}

</mosaic_0001>

<llo_original>
// kernel: _forward_jit.1
$region0: #{_forward_jit.1}
  #allocation0 [shape = 'u32[]', space=smem, size = 0x4, offset = 0x4, fixed_abs, tag = 'smem constant byte address 0x4 - core index']
  #allocation1 [shape = 'u32[144,128]{1,0:T(1,128)}', space=vmem, size = 0x12000, scoped, tag = 'internal scratch']
  %s0 = inlined_call_operand.vmem [shape: f32[8,16,32], index: 0, kind: input, shape index: {}]
  %s1 = inlined_call_operand.vmem [shape: f32[8,16], index: 1, kind: input, shape index: {}]
  %s2 = inlined_call_operand.vmem [shape: f32[120,32], index: 2, kind: input, shape index: {}]
  %s3 = inlined_call_operand.hbm [shape: f32[8,28], index: 3, kind: output, shape index: {0}]
  %s4 = inlined_call_operand.vmem [shape: f32[8,16,8], index: 4, kind: output, shape index: {1}]
  %5 = xla_tuple %s3, %s4
  %s6 = sld [smem:[#allocation0]]
  $region30: #{_forward_jit.1} parent=0
    _
  %s8 = ssub.s32 1, %s6
  %s9 = scalar_select 0, %s8, %s6
  $region1: #{_forward_jit.1} parent=0
    #allocation2 [shape = 'u8[4096]{0}', space=vmem, size = 0x1000, scoped, tag = 'output window, operand 0, single buffered']
    #allocation3 [shape = 's32[1]{0}', space=sflag, size = 0x4, scoped, tag = 'scoped memory for _forward_jit.1']
    %10 = vsyncpa [#allocation3], 0
    // Predicated region
    $region2: #{_forward_jit.1} parent=1 // pred_check
      _
    $region3: #{_forward_jit.1} parent=1 // pred_check_branch
      %12 = sbr.rel (0) target = $region5
    $region4: #{_forward_jit.1} parent=1 // pred_region
      _
    $region5: #{_forward_jit.1} parent=1 // pred_fallthru
      _
    // Predicated region
    $region6: #{_forward_jit.1} parent=1 // pred_check
      _
    $region7: #{_forward_jit.1} parent=1 // pred_check_branch
      %14 = sbr.rel (0) target = $region9
    $region8: #{_forward_jit.1} parent=1 // pred_region
      _
    $region9: #{_forward_jit.1} parent=1 // pred_fallthru
      _
    // Predicated region
    $region10: #{_forward_jit.1} parent=1 // pred_check
      _
    $region11: #{_forward_jit.1} parent=1 // pred_check_branch
      %16 = sbr.rel (0) target = $region13
    $region12: #{_forward_jit.1} parent=1 // pred_region
      _
    $region13: #{_forward_jit.1} parent=1 // pred_fallthru
      _
    %v17 = vld [vmem:[%s2] sm:$0xff]
    %v18 = vld [vmem:[%s2 + $0x8] sm:$0xff]
    %v19 = vld [vmem:[%s2 + $0x10] sm:$0xff]
    %v20 = vld [vmem:[%s2 + $0x18] sm:$0xff]
    %v21 = vld [vmem:[%s2 + $0x20] sm:$0x1]
    %v22 = vld [vmem:[%s2 + $0x28] sm:$0xff]
    %v23 = vld [vmem:[%s2 + $0x30] sm:$0xff]
    %v24 = vld [vmem:[%s2 + $0x38] sm:$0xff]
    %v25 = vld [vmem:[%s2 + $0x40] sm:$0xff]
    %v26 = vld [vmem:[%s2 + $0x48] sm:$0x1]
    %v27 = vld [vmem:[%s2 + $0x50] sm:$0xff]
    %v28 = vld [vmem:[%s2 + $0x58] sm:$0xff]
    %v29 = vld [vmem:[%s2 + $0x60] sm:$0xff]
    %v30 = vld [vmem:[%s2 + $0x68] sm:$0xff]
    %v31 = vld [vmem:[%s2 + $0x70] sm:$0x1]
    %v32 = vld [vmem:[%s0] sm:$0xff]
    %v33 = vld [vmem:[%s0 + $0x8] sm:$0xff]
    %v34 = vld [vmem:[%s0 + $0x10] sm:$0xff]
    %v35 = vld [vmem:[%s0 + $0x18] sm:$0xff]
    %v36 = vld [vmem:[%s0 + $0x20] sm:$0xff]
    %v37 = vld [vmem:[%s0 + $0x28] sm:$0xff]
    %v38 = vld [vmem:[%s0 + $0x30] sm:$0xff]
    %v39 = vld [vmem:[%s0 + $0x38] sm:$0xff]
    %v40 = vld [vmem:[%s0 + $0x40] sm:$0xff]
    %v41 = vld [vmem:[%s0 + $0x48] sm:$0xff]
    %v42 = vld [vmem:[%s0 + $0x50] sm:$0xff]
    %v43 = vld [vmem:[%s0 + $0x58] sm:$0xff]
    %v44 = vld [vmem:[%s0 + $0x60] sm:$0xff]
    %v45 = vld [vmem:[%s0 + $0x68] sm:$0xff]
    %v46 = vld [vmem:[%s0 + $0x70] sm:$0xff]
    %v47 = vld [vmem:[%s0 + $0x78] sm:$0xff]
    %v48 = vlaneseq
    %v49 = vshrl.u32 %v48, 7
    %v50 = vlaneseq
    %v51 = vand.u32 %v50, 127
    %v52 = vmul.u32 %v49, 16
    %vm53 = vcmp.eq.s32.totalorder %v51, %v52
    %v54 = vsel %vm53, 1, 0
    %v55 = vcvt.s32.f32 %v54
    %56 = vmatprep.subr.mxu0 0.0
    %57 = vmatpush1.msra.mxu0 %v47
    %58 = vmatprep.subr.mxu0 0.0
    %59 = vmatpush1.msra.mxu0 %v46
    %60 = vmatprep.subr.mxu0 0.0
    %61 = vmatpush1.msra.mxu0 %v45
    %62 = vmatprep.subr.mxu0 0.0
    %63 = vmatpush1.msra.mxu0 %v44
    %64 = vmatprep.subr.mxu0 0.0
    %65 = vmatpush1.msra.mxu0 %v43
    %66 = vmatprep.subr.mxu0 0.0
    %67 = vmatpush1.msra.mxu0 %v42
    %68 = vmatprep.subr.mxu0 0.0
    %69 = vmatpush1.msra.mxu0 %v41
    %70 = vmatprep.subr.mxu0 0.0
    %71 = vmatpush1.msra.mxu0 %v40
    %72 = vmatprep.subr.mxu0 0.0
    %73 = vmatpush1.msra.mxu0 %v39
    %74 = vmatprep.subr.mxu0 0.0
    %75 = vmatpush1.msra.mxu0 %v38
    %76 = vmatprep.subr.mxu0 0.0
    %77 = vmatpush1.msra.mxu0 %v37
    %78 = vmatprep.subr.mxu0 0.0
    %79 = vmatpush1.msra.mxu0 %v36
    %80 = vmatprep.subr.mxu0 0.0
    %81 = vmatpush1.msra.mxu0 %v35
    %82 = vmatprep.subr.mxu0 0.0
    %83 = vmatpush1.msra.mxu0 %v34
    %84 = vmatprep.subr.mxu0 0.0
    %85 = vmatpush1.msra.mxu0 %v33
    %86 = vmatprep.subr.mxu0 0.0
    %87 = vmatpush1.msra.mxu0 %v32
    %88 = vmatprep.subr.mxu0 0.0
    %89 = vmatpush2.msra.mxu0 0.0
    %90 = vmatprep.subr.mxu0 0.0
    %91 = vmatpush2.msra.mxu0 0.0
    %92 = vmatprep.subr.mxu0 0.0
    %93 = vmatpush2.msra.mxu0 0.0
    %94 = vmatprep.subr.mxu0 0.0
    %95 = vmatpush2.msra.mxu0 0.0
    %96 = vmatprep.subr.mxu0 0.0
    %97 = vmatpush2.msra.mxu0 0.0
    %98 = vmatprep.subr.mxu0 0.0
    %99 = vmatpush2.msra.mxu0 0.0
    %100 = vmatprep.subr.mxu0 0.0
    %101 = vmatpush2.msra.mxu0 0.0
    %102 = vmatprep.subr.mxu0 0.0
    %103 = vmatpush2.msra.mxu0 0.0
    %104 = vmatprep.subr.mxu0 0.0
    %105 = vmatpush2.msra.mxu0 0.0
    %106 = vmatprep.subr.mxu0 0.0
    %107 = vmatpush2.msra.mxu0 0.0
    %108 = vmatprep.subr.mxu0 0.0
    %109 = vmatpush2.msra.mxu0 0.0
    %110 = vmatprep.subr.mxu0 0.0
    %111 = vmatpush2.msra.mxu0 0.0
    %112 = vmatprep.subr.mxu0 0.0
    %113 = vmatpush2.msra.mxu0 0.0
    %114 = vmatprep.subr.mxu0 0.0
    %115 = vmatpush2.msra.mxu0 0.0
    %116 = vmatprep.subr.mxu0 0.0
    %117 = vmatpush2.msra.mxu0 0.0
    %118 = vmatprep.subr.mxu0 0.0
    %119 = vmatpush2.msra.mxu0 0.0
    %120 = vmatprep.mubr.f32.mxu0 0.0
    %121 = vmatmul.mubr.f32.gmra.mxu0 %v55
    %v122 = vpop.f32.mrf.mxu0
    %v123 = vadd.f32 0.0, %v122
    %v124 = vpop.f32.mrf.mxu0
    %125 = vdwg.mxu0
    %v126 = vlaneseq
    %v127 = vshrl.u32 %v126, 7
    %v128 = vsub.s32 0, %v127
    %v129 = vrot.slane %v21, %v128
    %vm130 = vcmask 261120
    %v132 = vsel %vm130, %v123, 0
    %134 = vmatprep.subr.mxu0 0.0
    %135 = vmatpush1.msra.mxu0 0.0
    %136 = vmatprep.subr.mxu0 0.0
    %137 = vmatpush1.msra.mxu0 0.0
    %138 = vmatprep.subr.mxu0 0.0
    %139 = vmatpush1.msra.mxu0 0.0
    %140 = vmatprep.subr.mxu0 0.0
    %141 = vmatpush1.msra.mxu0 0.0
    %142 = vmatprep.subr.mxu0 0.0
    %143 = vmatpush1.msra.mxu0 0.0
    %144 = vmatprep.subr.mxu0 0.0
    %145 = vmatpush1.msra.mxu0 0.0
    %146 = vmatprep.subr.mxu0 0.0
    %147 = vmatpush1.msra.mxu0 0.0
    %148 = vmatprep.subr.mxu0 0.0
    %149 = vmatpush1.msra.mxu0 0.0
    %150 = vmatprep.subr.mxu0 0.0
    %151 = vmatpush1.msra.mxu0 0.0
    %152 = vmatprep.subr.mxu0 0.0
    %153 = vmatpush1.msra.mxu0 0.0
    %154 = vmatprep.subr.mxu0 0.0
    %155 = vmatpush1.msra.mxu0 0.0
    %156 = vmatprep.subr.mxu0 0.0
    %157 = vmatpush1.msra.mxu0 0.0
    %158 = vmatprep.subr.mxu0 0.0
    %159 = vmatpush1.msra.mxu0 %v20
    %160 = vmatprep.subr.mxu0 0.0
    %161 = vmatpush1.msra.mxu0 %v19
    %162 = vmatprep.subr.mxu0 0.0
    %163 = vmatpush1.msra.mxu0 %v18
    %164 = vmatprep.subr.mxu0 0.0
    %165 = vmatpush1.msra.mxu0 %v17
    %166 = vmatprep.subr.mxu0 0.0
    %167 = vmatpush2.msra.mxu0 0.0
    %168 = vmatprep.subr.mxu0 0.0
    %169 = vmatpush2.msra.mxu0 0.0
    %170 = vmatprep.subr.mxu0 0.0
    %171 = vmatpush2.msra.mxu0 0.0
    %172 = vmatprep.subr.mxu0 0.0
    %173 = vmatpush2.msra.mxu0 0.0
    %174 = vmatprep.subr.mxu0 0.0
    %175 = vmatpush2.msra.mxu0 0.0
    %176 = vmatprep.subr.mxu0 0.0
    %177 = vmatpush2.msra.mxu0 0.0
    %178 = vmatprep.subr.mxu0 0.0
    %179 = vmatpush2.msra.mxu0 0.0
    %180 = vmatprep.subr.mxu0 0.0
    %181 = vmatpush2.msra.mxu0 0.0
    %182 = vmatprep.subr.mxu0 0.0
    %183 = vmatpush2.msra.mxu0 0.0
    %184 = vmatprep.subr.mxu0 0.0
    %185 = vmatpush2.msra.mxu0 0.0
    %186 = vmatprep.subr.mxu0 0.0
    %187 = vmatpush2.msra.mxu0 0.0
    %188 = vmatprep.subr.mxu0 0.0
    %189 = vmatpush2.msra.mxu0 0.0
    %190 = vmatprep.subr.mxu0 0.0
    %191 = vmatpush2.msra.mxu0 0.0
    %192 = vmatprep.subr.mxu0 0.0
    %193 = vmatpush2.msra.mxu0 0.0
    %194 = vmatprep.subr.mxu0 0.0
    %195 = vmatpush2.msra.mxu0 0.0
    %196 = vmatprep.subr.mxu0 0.0
    %197 = vmatpush2.msra.mxu0 0.0
    %198 = vmatprep.mubr.f32.mxu0 0.0
    %199 = vmatmul.mubr.f32.gmra.mxu0 %v132
    %v200 = vpop.f32.mrf.mxu0
    %v201 = vadd.f32 %v129, %v200
    %v202 = vpop.f32.mrf.mxu0
    %203 = vdwg.mxu0
    %v204 = vtanh.pop %v201
    %v205 = vlaneseq
    %v206 = vshrl.u32 %v205, 7
    %v207 = vsub.s32 0, %v206
    %v208 = vrot.slane %v26, %v207
    %v210 = vsel %vm130, %v204, 0
    %212 = vmatprep.subr.mxu0 0.0
    %213 = vmatpush1.msra.mxu0 0.0
    %214 = vmatprep.subr.mxu0 0.0
    %215 = vmatpush1.msra.mxu0 0.0
    %216 = vmatprep.subr.mxu0 0.0
    %217 = vmatpush1.msra.mxu0 0.0
    %218 = vmatprep.subr.mxu0 0.0
    %219 = vmatpush1.msra.mxu0 0.0
    %220 = vmatprep.subr.mxu0 0.0
    %221 = vmatpush1.msra.mxu0 0.0
    %222 = vmatprep.subr.mxu0 0.0
    %223 = vmatpush1.msra.mxu0 0.0
    %224 = vmatprep.subr.mxu0 0.0
    %225 = vmatpush1.msra.mxu0 0.0
    %226 = vmatprep.subr.mxu0 0.0
    %227 = vmatpush1.msra.mxu0 0.0
    %228 = vmatprep.subr.mxu0 0.0
    %229 = vmatpush1.msra.mxu0 0.0
    %230 = vmatprep.subr.mxu0 0.0
    %231 = vmatpush1.msra.mxu0 0.0
    %232 = vmatprep.subr.mxu0 0.0
    %233 = vmatpush1.msra.mxu0 0.0
    %234 = vmatprep.subr.mxu0 0.0
    %235 = vmatpush1.msra.mxu0 0.0
    %236 = vmatprep.subr.mxu0 0.0
    %237 = vmatpush1.msra.mxu0 %v25
    %238 = vmatprep.subr.mxu0 0.0
    %239 = vmatpush1.msra.mxu0 %v24
    %240 = vmatprep.subr.mxu0 0.0
    %241 = vmatpush1.msra.mxu0 %v23
    %242 = vmatprep.subr.mxu0 0.0
    %243 = vmatpush1.msra.mxu0 %v22
    %244 = vmatprep.subr.mxu0 0.0
    %245 = vmatpush2.msra.mxu0 0.0
    %246 = vmatprep.subr.mxu0 0.0
    %247 = vmatpush2.msra.mxu0 0.0
    %248 = vmatprep.subr.mxu0 0.0
    %249 = vmatpush2.msra.mxu0 0.0
    %250 = vmatprep.subr.mxu0 0.0
    %251 = vmatpush2.msra.mxu0 0.0
    %252 = vmatprep.subr.mxu0 0.0
    %253 = vmatpush2.msra.mxu0 0.0
    %254 = vmatprep.subr.mxu0 0.0
    %255 = vmatpush2.msra.mxu0 0.0
    %256 = vmatprep.subr.mxu0 0.0
    %257 = vmatpush2.msra.mxu0 0.0
    %258 = vmatprep.subr.mxu0 0.0
    %259 = vmatpush2.msra.mxu0 0.0
    %260 = vmatprep.subr.mxu0 0.0
    %261 = vmatpush2.msra.mxu0 0.0
    %262 = vmatprep.subr.mxu0 0.0
    %263 = vmatpush2.msra.mxu0 0.0
    %264 = vmatprep.subr.mxu0 0.0
    %265 = vmatpush2.msra.mxu0 0.0
    %266 = vmatprep.subr.mxu0 0.0
    %267 = vmatpush2.msra.mxu0 0.0
    %268 = vmatprep.subr.mxu0 0.0
    %269 = vmatpush2.msra.mxu0 0.0
    %270 = vmatprep.subr.mxu0 0.0
    %271 = vmatpush2.msra.mxu0 0.0
    %272 = vmatprep.subr.mxu0 0.0
    %273 = vmatpush2.msra.mxu0 0.0
    %274 = vmatprep.subr.mxu0 0.0
    %275 = vmatpush2.msra.mxu0 0.0
    %276 = vmatprep.mubr.f32.mxu0 0.0
    %277 = vmatmul.mubr.f32.gmra.mxu0 %v210
    %v278 = vpop.f32.mrf.mxu0
    %v279 = vadd.f32 %v208, %v278
    %v280 = vpop.f32.mrf.mxu0
    %281 = vdwg.mxu0
    %v282 = vsub.f32 0.0, %v279
    %v283 = vmax.f32 %v282, 0.0
    %v284 = vsub.f32 0.0, %v282
    %vm285 = vcmp.ne.f32.partialorder %v284, %v284
    %v286 = vadd.f32 %v282, 0.0
    %v287 = vand.u32 2147483647, %v284
    %v288 = vsub.f32 0.0, %v287
    %v289 = vmul.f32 %v288, 1.442695
    %v290 = vpow.pop %v289
    %v291 = vadd.f32 %v290, 1.0
    %v292 = vlog2.pop %v291
    %v293 = vmul.f32 %v292, 0.6931472
    %v294 = vmul.f32 -0.5, %v290
    %v295 = vadd.f32 %v294, 1.0
    %v296 = vmul.f32 %v295, %v290
    %v297 = vand.u32 2147483647, %v290
    %vm298 = vcmp.lt.f32.partialorder %v297, 0.0004427343
    %v299 = vsel %vm298, %v296, %v293
    %v300 = vadd.f32 %v283, %v299
    %v301 = vsel %vm285, %v286, %v300
    %v302 = vsub.f32 0.0, %v301
    %vm303 = vcmp.ge.s32.totalorder %v51, 12
    %vm304 = vcmp.lt.s32.totalorder %v51, 18
    %vm305 = vmand %vm303, %vm304
    %v306 = vsel %vm305, %v279, -1e+30
    %vm307 = vcmask 228352
    %v308 = vsel %vm307, %v306, -inf
    %309 = vmax.xlane.f32.xlu0 %v308
    %v310 = vpop.xlane.xlu0 %309
    %v311 = vsub.f32 %v279, %v310
    %v312 = vmul.f32 %v311, 1.442695
    %v313 = vpow.pop %v312
    %v314 = vsel %vm305, %v313, 0.0
    %v315 = vsel %vm307, %v314, 0.0
    %316 = vadd.xlane.f32.xlu0 %v315
    %v317 = vpop.xlane.xlu0 %316
    %v318 = vlog2.pop %v317
    %v319 = vmul.f32 %v318, 0.6931472
    %v320 = vadd.f32 %v310, %v319
    %v321 = vsub.f32 %v279, %v320
    %v322 = vsel %vm305, %v321, %v302
    %vm323 = vcmp.ge.s32.totalorder %v51, 18
    %vm324 = vcmp.lt.s32.totalorder %v51, 22
    %vm325 = vmand %vm323, %vm324
    %v326 = vsel %vm325, %v279, -1e+30
    %v327 = vsel %vm307, %v326, -inf
    %328 = vmax.xlane.f32.xlu0 %v327
    %v329 = vpop.xlane.xlu0 %328
    %v330 = vsub.f32 %v279, %v329
    %v331 = vmul.f32 %v330, 1.442695
    %v332 = vpow.pop %v331
    %v333 = vsel %vm325, %v332, 0.0
    %v334 = vsel %vm307, %v333, 0.0
    %335 = vadd.xlane.f32.xlu0 %v334
    %v336 = vpop.xlane.xlu0 %335
    %v337 = vlog2.pop %v336
    %v338 = vmul.f32 %v337, 0.6931472
    %v339 = vadd.f32 %v329, %v338
    %v340 = vsub.f32 %v279, %v339
    %v341 = vsel %vm325, %v340, %v322
    %vm342 = vcmp.ge.s32.totalorder %v51, 22
    %vm343 = vcmp.lt.s32.totalorder %v51, 26
    %vm344 = vmand %vm342, %vm343
    %v345 = vsel %vm344, %v279, -1e+30
    %v346 = vsel %vm307, %v345, -inf
    %347 = vmax.xlane.f32.xlu0 %v346
    %v348 = vpop.xlane.xlu0 %347
    %v349 = vsub.f32 %v279, %v348
    %v350 = vmul.f32 %v349, 1.442695
    %v351 = vpow.pop %v350
    %v352 = vsel %vm344, %v351, 0.0
    %v353 = vsel %vm307, %v352, 0.0
    %354 = vadd.xlane.f32.xlu0 %v353
    %v355 = vpop.xlane.xlu0 %354
    %v356 = vlog2.pop %v355
    %v357 = vmul.f32 %v356, 0.6931472
    %v358 = vadd.f32 %v348, %v357
    %v359 = vsub.f32 %v279, %v358
    %v360 = vsel %vm344, %v359, %v341
    %vm361 = vcmp.ge.s32.totalorder %v51, 26
    %vm362 = vcmp.lt.s32.totalorder %v51, 28
    %vm363 = vmand %vm361, %vm362
    %v364 = vsel %vm363, %v279, -1e+30
    %v365 = vsel %vm307, %v364, -inf
    %366 = vmax.xlane.f32.xlu0 %v365
    %v367 = vpop.xlane.xlu0 %366
    %v368 = vsub.f32 %v279, %v367
    %v369 = vmul.f32 %v368, 1.442695
    %v370 = vpow.pop %v369
    %v371 = vsel %vm363, %v370, 0.0
    %v372 = vsel %vm307, %v371, 0.0
    %373 = vadd.xlane.f32.xlu0 %v372
    %v374 = vpop.xlane.xlu0 %373
    %v375 = vlog2.pop %v374
    %v376 = vmul.f32 %v375, 0.6931472
    %v377 = vadd.f32 %v367, %v376
    %v378 = vsub.f32 %v279, %v377
    %v379 = vsel %vm363, %v378, %v360
    %380 = vst.msk [vmem:[#allocation2] sm:$0xff] %vm307, %v379
    %v381 = vlaneseq
    %v382 = vshrl.u32 %v381, 7
    %v383 = vsub.s32 0, %v382
    %v384 = vrot.slane %v31, %v383
    %v386 = vsel %vm130, %v32, 0
    %v389 = vsel %vm130, %v33, 0
    %v392 = vsel %vm130, %v34, 0
    %v395 = vsel %vm130, %v35, 0
    %v398 = vsel %vm130, %v36, 0
    %v401 = vsel %vm130, %v37, 0
    %v404 = vsel %vm130, %v38, 0
    %v407 = vsel %vm130, %v39, 0
    %v410 = vsel %vm130, %v40, 0
    %v413 = vsel %vm130, %v41, 0
    %v416 = vsel %vm130, %v42, 0
    %v419 = vsel %vm130, %v43, 0
    %v422 = vsel %vm130, %v44, 0
    %v425 = vsel %vm130, %v45, 0
    %v428 = vsel %vm130, %v46, 0
    %v431 = vsel %vm130, %v47, 0
    %433 = vmatprep.subr.mxu0 0.0
    %434 = vmatpush1.msra.mxu0 0.0
    %435 = vmatprep.subr.mxu0 0.0
    %436 = vmatpush1.msra.mxu0 0.0
    %437 = vmatprep.subr.mxu0 0.0
    %438 = vmatpush1.msra.mxu0 0.0
    %439 = vmatprep.subr.mxu0 0.0
    %440 = vmatpush1.msra.mxu0 0.0
    %441 = vmatprep.subr.mxu0 0.0
    %442 = vmatpush1.msra.mxu0 0.0
    %443 = vmatprep.subr.mxu0 0.0
    %444 = vmatpush1.msra.mxu0 0.0
    %445 = vmatprep.subr.mxu0 0.0
    %446 = vmatpush1.msra.mxu0 0.0
    %447 = vmatprep.subr.mxu0 0.0
    %448 = vmatpush1.msra.mxu0 0.0
    %449 = vmatprep.subr.mxu0 0.0
    %450 = vmatpush1.msra.mxu0 0.0
    %451 = vmatprep.subr.mxu0 0.0
    %452 = vmatpush1.msra.mxu0 0.0
    %453 = vmatprep.subr.mxu0 0.0
    %454 = vmatpush1.msra.mxu0 0.0
    %455 = vmatprep.subr.mxu0 0.0
    %456 = vmatpush1.msra.mxu0 0.0
    %457 = vmatprep.subr.mxu0 0.0
    %458 = vmatpush1.msra.mxu0 %v30
    %459 = vmatprep.subr.mxu0 0.0
    %460 = vmatpush1.msra.mxu0 %v29
    %461 = vmatprep.subr.mxu0 0.0
    %462 = vmatpush1.msra.mxu0 %v28
    %463 = vmatprep.subr.mxu0 0.0
    %464 = vmatpush1.msra.mxu0 %v27
    %465 = vmatprep.subr.mxu0 0.0
    %466 = vmatpush2.msra.mxu0 0.0
    %467 = vmatprep.subr.mxu0 0.0
    %468 = vmatpush2.msra.mxu0 0.0
    %469 = vmatprep.subr.mxu0 0.0
    %470 = vmatpush2.msra.mxu0 0.0
    %471 = vmatprep.subr.mxu0 0.0
    %472 = vmatpush2.msra.mxu0 0.0
    %473 = vmatprep.subr.mxu0 0.0
    %474 = vmatpush2.msra.mxu0 0.0
    %475 = vmatprep.subr.mxu0 0.0
    %476 = vmatpush2.msra.mxu0 0.0
    %477 = vmatprep.subr.mxu0 0.0
    %478 = vmatpush2.msra.mxu0 0.0
    %479 = vmatprep.subr.mxu0 0.0
    %480 = vmatpush2.msra.mxu0 0.0
    %481 = vmatprep.subr.mxu0 0.0
    %482 = vmatpush2.msra.mxu0 0.0
    %483 = vmatprep.subr.mxu0 0.0
    %484 = vmatpush2.msra.mxu0 0.0
    %485 = vmatprep.subr.mxu0 0.0
    %486 = vmatpush2.msra.mxu0 0.0
    %487 = vmatprep.subr.mxu0 0.0
    %488 = vmatpush2.msra.mxu0 0.0
    %489 = vmatprep.subr.mxu0 0.0
    %490 = vmatpush2.msra.mxu0 0.0
    %491 = vmatprep.subr.mxu0 0.0
    %492 = vmatpush2.msra.mxu0 0.0
    %493 = vmatprep.subr.mxu0 0.0
    %494 = vmatpush2.msra.mxu0 0.0
    %495 = vmatprep.subr.mxu0 0.0
    %496 = vmatpush2.msra.mxu0 0.0
    %497 = vmatprep.mubr.f32.mxu0 0.0
    %498 = vmatmul.mubr.f32.gmra.mxu0 %v386
    %v499 = vpop.f32.mrf.mxu0
    %v500 = vadd.f32 %v384, %v499
    %v501 = vpop.f32.mrf.mxu0
    %502 = vmatprep.mubr.f32.mxu0 0.0
    %503 = vmatmul.mubr.f32.gmra.mxu0 %v389
    %v504 = vpop.f32.mrf.mxu0
    %v505 = vadd.f32 %v384, %v504
    %v506 = vpop.f32.mrf.mxu0
    %507 = vmatprep.mubr.f32.mxu0 0.0
    %508 = vmatmul.mubr.f32.gmra.mxu0 %v392
    %v509 = vpop.f32.mrf.mxu0
    %v510 = vadd.f32 %v384, %v509
    %v511 = vpop.f32.mrf.mxu0
    %512 = vmatprep.mubr.f32.mxu0 0.0
    %513 = vmatmul.mubr.f32.gmra.mxu0 %v395
    %v514 = vpop.f32.mrf.mxu0
    %v515 = vadd.f32 %v384, %v514
    %v516 = vpop.f32.mrf.mxu0
    %517 = vmatprep.mubr.f32.mxu0 0.0
    %518 = vmatmul.mubr.f32.gmra.mxu0 %v398
    %v519 = vpop.f32.mrf.mxu0
    %v520 = vadd.f32 %v384, %v519
    %v521 = vpop.f32.mrf.mxu0
    %522 = vmatprep.mubr.f32.mxu0 0.0
    %523 = vmatmul.mubr.f32.gmra.mxu0 %v401
    %v524 = vpop.f32.mrf.mxu0
    %v525 = vadd.f32 %v384, %v524
    %v526 = vpop.f32.mrf.mxu0
    %527 = vmatprep.mubr.f32.mxu0 0.0
    %528 = vmatmul.mubr.f32.gmra.mxu0 %v404
    %v529 = vpop.f32.mrf.mxu0
    %v530 = vadd.f32 %v384, %v529
    %v531 = vpop.f32.mrf.mxu0
    %532 = vmatprep.mubr.f32.mxu0 0.0
    %533 = vmatmul.mubr.f32.gmra.mxu0 %v407
    %v534 = vpop.f32.mrf.mxu0
    %v535 = vadd.f32 %v384, %v534
    %v536 = vpop.f32.mrf.mxu0
    %537 = vmatprep.mubr.f32.mxu0 0.0
    %538 = vmatmul.mubr.f32.gmra.mxu0 %v410
    %v539 = vpop.f32.mrf.mxu0
    %v540 = vadd.f32 %v384, %v539
    %v541 = vpop.f32.mrf.mxu0
    %542 = vmatprep.mubr.f32.mxu0 0.0
    %543 = vmatmul.mubr.f32.gmra.mxu0 %v413
    %v544 = vpop.f32.mrf.mxu0
    %v545 = vadd.f32 %v384, %v544
    %v546 = vpop.f32.mrf.mxu0
    %547 = vmatprep.mubr.f32.mxu0 0.0
    %548 = vmatmul.mubr.f32.gmra.mxu0 %v416
    %v549 = vpop.f32.mrf.mxu0
    %v550 = vadd.f32 %v384, %v549
    %v551 = vpop.f32.mrf.mxu0
    %552 = vmatprep.mubr.f32.mxu0 0.0
    %553 = vmatmul.mubr.f32.gmra.mxu0 %v419
    %v554 = vpop.f32.mrf.mxu0
    %v555 = vadd.f32 %v384, %v554
    %v556 = vpop.f32.mrf.mxu0
    %557 = vmatprep.mubr.f32.mxu0 0.0
    %558 = vmatmul.mubr.f32.gmra.mxu0 %v422
    %v559 = vpop.f32.mrf.mxu0
    %v560 = vadd.f32 %v384, %v559
    %v561 = vpop.f32.mrf.mxu0
    %562 = vmatprep.mubr.f32.mxu0 0.0
    %563 = vmatmul.mubr.f32.gmra.mxu0 %v425
    %v564 = vpop.f32.mrf.mxu0
    %v565 = vadd.f32 %v384, %v564
    %v566 = vpop.f32.mrf.mxu0
    %567 = vmatprep.mubr.f32.mxu0 0.0
    %568 = vmatmul.mubr.f32.gmra.mxu0 %v428
    %v569 = vpop.f32.mrf.mxu0
    %v570 = vadd.f32 %v384, %v569
    %v571 = vpop.f32.mrf.mxu0
    %572 = vmatprep.mubr.f32.mxu0 0.0
    %573 = vmatmul.mubr.f32.gmra.mxu0 %v431
    %v574 = vpop.f32.mrf.mxu0
    %v575 = vadd.f32 %v384, %v574
    %v576 = vpop.f32.mrf.mxu0
    %577 = vdwg.mxu0
    %v578 = vld [vmem:[%s1] sm:$0xff]
    %v579 = vlaneseq
    %v580 = vshrl.u32 %v579, 7
    %v581 = vsub.s32 0, %v580
    %v582 = vrot.slane %v578, %v581
    %584 = vbcast.lane.b32.xlu0 %v582, 256
    %v585 = vpop.permute.xlu0 %584
    %s587 = sor.u32 256, 8
    %588 = vbcast.lane.b32.xlu0 %v582, %s587
    %v589 = vpop.permute.xlu0 %588
    %v590 = vlaneseq
    %v591 = vshrl.u32 %v590, 7
    %v592 = vsub.s32 1, %v591
    %v593 = vrot.slane %v578, %v592
    %595 = vbcast.lane.b32.xlu0 %v593, 256
    %v596 = vpop.permute.xlu0 %595
    %s598 = sor.u32 256, 8
    %599 = vbcast.lane.b32.xlu0 %v593, %s598
    %v600 = vpop.permute.xlu0 %599
    %v601 = vlaneseq
    %v602 = vshrl.u32 %v601, 7
    %v603 = vsub.s32 2, %v602
    %v604 = vrot.slane %v578, %v603
    %606 = vbcast.lane.b32.xlu0 %v604, 256
    %v607 = vpop.permute.xlu0 %606
    %s609 = sor.u32 256, 8
    %610 = vbcast.lane.b32.xlu0 %v604, %s609
    %v611 = vpop.permute.xlu0 %610
    %v612 = vlaneseq
    %v613 = vshrl.u32 %v612, 7
    %v614 = vsub.s32 3, %v613
    %v615 = vrot.slane %v578, %v614
    %617 = vbcast.lane.b32.xlu0 %v615, 256
    %v618 = vpop.permute.xlu0 %617
    %s620 = sor.u32 256, 8
    %621 = vbcast.lane.b32.xlu0 %v615, %s620
    %v622 = vpop.permute.xlu0 %621
    %v623 = vlaneseq
    %v624 = vshrl.u32 %v623, 7
    %v625 = vsub.s32 4, %v624
    %v626 = vrot.slane %v578, %v625
    %628 = vbcast.lane.b32.xlu0 %v626, 256
    %v629 = vpop.permute.xlu0 %628
    %s631 = sor.u32 256, 8
    %632 = vbcast.lane.b32.xlu0 %v626, %s631
    %v633 = vpop.permute.xlu0 %632
    %v634 = vlaneseq
    %v635 = vshrl.u32 %v634, 7
    %v636 = vsub.s32 5, %v635
    %v637 = vrot.slane %v578, %v636
    %639 = vbcast.lane.b32.xlu0 %v637, 256
    %v640 = vpop.permute.xlu0 %639
    %s642 = sor.u32 256, 8
    %643 = vbcast.lane.b32.xlu0 %v637, %s642
    %v644 = vpop.permute.xlu0 %643
    %v645 = vlaneseq
    %v646 = vshrl.u32 %v645, 7
    %v647 = vsub.s32 6, %v646
    %v648 = vrot.slane %v578, %v647
    %650 = vbcast.lane.b32.xlu0 %v648, 256
    %v651 = vpop.permute.xlu0 %650
    %s653 = sor.u32 256, 8
    %654 = vbcast.lane.b32.xlu0 %v648, %s653
    %v655 = vpop.permute.xlu0 %654
    %v656 = vlaneseq
    %v657 = vshrl.u32 %v656, 7
    %v658 = vsub.s32 7, %v657
    %v659 = vrot.slane %v578, %v658
    %661 = vbcast.lane.b32.xlu0 %v659, 256
    %v662 = vpop.permute.xlu0 %661
    %s664 = sor.u32 256, 8
    %665 = vbcast.lane.b32.xlu0 %v659, %s664
    %v666 = vpop.permute.xlu0 %665
    %vm667 = vcmp.eq.s32.totalorder %v51, 0
    %vm668 = vcmp.eq.s32.totalorder %v51, 4
    %vm669 = vmor %vm667, %vm668
    %v670 = vsel %vm669, 1, 0
    %v671 = vcvt.s32.f32 %v670
    %v672 = vmax.f32 %v671, %v585
    %v673 = vmax.f32 %v671, %v589
    %v674 = vmax.f32 %v671, %v596
    %v675 = vmax.f32 %v671, %v600
    %v676 = vmax.f32 %v671, %v607
    %v677 = vmax.f32 %v671, %v611
    %v678 = vmax.f32 %v671, %v618
    %v679 = vmax.f32 %v671, %v622
    %v680 = vmax.f32 %v671, %v629
    %v681 = vmax.f32 %v671, %v633
    %v682 = vmax.f32 %v671, %v640
    %v683 = vmax.f32 %v671, %v644
    %v684 = vmax.f32 %v671, %v651
    %v685 = vmax.f32 %v671, %v655
    %v686 = vmax.f32 %v671, %v662
    %v687 = vmax.f32 %v671, %v666
    %vm688 = vcmp.gt.f32.partialorder %v672, 0.5
    %vm689 = vcmp.gt.f32.partialorder %v673, 0.5
    %vm690 = vcmp.gt.f32.partialorder %v674, 0.5
    %vm691 = vcmp.gt.f32.partialorder %v675, 0.5
    %vm692 = vcmp.gt.f32.partialorder %v676, 0.5
    %vm693 = vcmp.gt.f32.partialorder %v677, 0.5
    %vm694 = vcmp.gt.f32.partialorder %v678, 0.5
    %vm695 = vcmp.gt.f32.partialorder %v679, 0.5
    %vm696 = vcmp.gt.f32.partialorder %v680, 0.5
    %vm697 = vcmp.gt.f32.partialorder %v681, 0.5
    %vm698 = vcmp.gt.f32.partialorder %v682, 0.5
    %vm699 = vcmp.gt.f32.partialorder %v683, 0.5
    %vm700 = vcmp.gt.f32.partialorder %v684, 0.5
    %vm701 = vcmp.gt.f32.partialorder %v685, 0.5
    %vm702 = vcmp.gt.f32.partialorder %v686, 0.5
    %vm703 = vcmp.gt.f32.partialorder %v687, 0.5
    %v704 = vsel %vm688, %v500, -1000000.0
    %v705 = vsel %vm689, %v505, -1000000.0
    %v706 = vsel %vm690, %v510, -1000000.0
    %v707 = vsel %vm691, %v515, -1000000.0
    %v708 = vsel %vm692, %v520, -1000000.0
    %v709 = vsel %vm693, %v525, -1000000.0
    %v710 = vsel %vm694, %v530, -1000000.0
    %v711 = vsel %vm695, %v535, -1000000.0
    %v712 = vsel %vm696, %v540, -1000000.0
    %v713 = vsel %vm697, %v545, -1000000.0
    %v714 = vsel %vm698, %v550, -1000000.0
    %v715 = vsel %vm699, %v555, -1000000.0
    %v716 = vsel %vm700, %v560, -1000000.0
    %v717 = vsel %vm701, %v565, -1000000.0
    %v718 = vsel %vm702, %v570, -1000000.0
    %v719 = vsel %vm703, %v575, -1000000.0
    %vm720 = vcmask 64512
    %v721 = vsel %vm720, %v704, -inf
    %v722 = vsel %vm720, %v705, -inf
    %v723 = vmax.f32 %v721, %v722
    %v724 = vrot.slane %v723, 4
    %v725 = vmax.f32 %v723, %v724
    %v726 = vrot.slane %v725, 2
    %v727 = vmax.f32 %v725, %v726
    %v728 = vrot.slane %v727, 1
    %v729 = vmax.f32 %v727, %v728
    %v730 = vsel %vm720, %v706, -inf
    %v731 = vsel %vm720, %v707, -inf
    %v732 = vmax.f32 %v730, %v731
    %v733 = vrot.slane %v732, 4
    %v734 = vmax.f32 %v732, %v733
    %v735 = vrot.slane %v734, 2
    %v736 = vmax.f32 %v734, %v735
    %v737 = vrot.slane %v736, 1
    %v738 = vmax.f32 %v736, %v737
    %v739 = vsel %vm720, %v708, -inf
    %v740 = vsel %vm720, %v709, -inf
    %v741 = vmax.f32 %v739, %v740
    %v742 = vrot.slane %v741, 4
    %v743 = vmax.f32 %v741, %v742
    %v744 = vrot.slane %v743, 2
    %v745 = vmax.f32 %v743, %v744
    %v746 = vrot.slane %v745, 1
    %v747 = vmax.f32 %v745, %v746
    %v748 = vsel %vm720, %v710, -inf
    %v749 = vsel %vm720, %v711, -inf
    %v750 = vmax.f32 %v748, %v749
    %v751 = vrot.slane %v750, 4
    %v752 = vmax.f32 %v750, %v751
    %v753 = vrot.slane %v752, 2
    %v754 = vmax.f32 %v752, %v753
    %v755 = vrot.slane %v754, 1
    %v756 = vmax.f32 %v754, %v755
    %v757 = vsel %vm720, %v712, -inf
    %v758 = vsel %vm720, %v713, -inf
    %v759 = vmax.f32 %v757, %v758
    %v760 = vrot.slane %v759, 4
    %v761 = vmax.f32 %v759, %v760
    %v762 = vrot.slane %v761, 2
    %v763 = vmax.f32 %v761, %v762
    %v764 = vrot.slane %v763, 1
    %v765 = vmax.f32 %v763, %v764
    %v766 = vsel %vm720, %v714, -inf
    %v767 = vsel %vm720, %v715, -inf
    %v768 = vmax.f32 %v766, %v767
    %v769 = vrot.slane %v768, 4
    %v770 = vmax.f32 %v768, %v769
    %v771 = vrot.slane %v770, 2
    %v772 = vmax.f32 %v770, %v771
    %v773 = vrot.slane %v772, 1
    %v774 = vmax.f32 %v772, %v773
    %v775 = vsel %vm720, %v716, -inf
    %v776 = vsel %vm720, %v717, -inf
    %v777 = vmax.f32 %v775, %v776
    %v778 = vrot.slane %v777, 4
    %v779 = vmax.f32 %v777, %v778
    %v780 = vrot.slane %v779, 2
    %v781 = vmax.f32 %v779, %v780
    %v782 = vrot.slane %v781, 1
    %v783 = vmax.f32 %v781, %v782
    %v784 = vsel %vm720, %v718, -inf
    %v785 = vsel %vm720, %v719, -inf
    %v786 = vmax.f32 %v784, %v785
    %v787 = vrot.slane %v786, 4
    %v788 = vmax.f32 %v786, %v787
    %v789 = vrot.slane %v788, 2
    %v790 = vmax.f32 %v788, %v789
    %v791 = vrot.slane %v790, 1
    %v792 = vmax.f32 %v790, %v791
    %v793 = vsub.f32 %v704, %v729
    %v794 = vsub.f32 %v705, %v729
    %v795 = vsub.f32 %v706, %v738
    %v796 = vsub.f32 %v707, %v738
    %v797 = vsub.f32 %v708, %v747
    %v798 = vsub.f32 %v709, %v747
    %v799 = vsub.f32 %v710, %v756
    %v800 = vsub.f32 %v711, %v756
    %v801 = vsub.f32 %v712, %v765
    %v802 = vsub.f32 %v713, %v765
    %v803 = vsub.f32 %v714, %v774
    %v804 = vsub.f32 %v715, %v774
    %v805 = vsub.f32 %v716, %v783
    %v806 = vsub.f32 %v717, %v783
    %v807 = vsub.f32 %v718, %v792
    %v808 = vsub.f32 %v719, %v792
    %v809 = vmul.f32 %v793, 1.442695
    %v810 = vpow.pop %v809
    %v811 = vmul.f32 %v794, 1.442695
    %v812 = vpow.pop %v811
    %v813 = vmul.f32 %v795, 1.442695
    %v814 = vpow.pop %v813
    %v815 = vmul.f32 %v796, 1.442695
    %v816 = vpow.pop %v815
    %v817 = vmul.f32 %v797, 1.442695
    %v818 = vpow.pop %v817
    %v819 = vmul.f32 %v798, 1.442695
    %v820 = vpow.pop %v819
    %v821 = vmul.f32 %v799, 1.442695
    %v822 = vpow.pop %v821
    %v823 = vmul.f32 %v800, 1.442695
    %v824 = vpow.pop %v823
    %v825 = vmul.f32 %v801, 1.442695
    %v826 = vpow.pop %v825
    %v827 = vmul.f32 %v802, 1.442695
    %v828 = vpow.pop %v827
    %v829 = vmul.f32 %v803, 1.442695
    %v830 = vpow.pop %v829
    %v831 = vmul.f32 %v804, 1.442695
    %v832 = vpow.pop %v831
    %v833 = vmul.f32 %v805, 1.442695
    %v834 = vpow.pop %v833
    %v835 = vmul.f32 %v806, 1.442695
    %v836 = vpow.pop %v835
    %v837 = vmul.f32 %v807, 1.442695
    %v838 = vpow.pop %v837
    %v839 = vmul.f32 %v808, 1.442695
    %v840 = vpow.pop %v839
    %v841 = vsel %vm720, %v810, 0.0
    %v842 = vsel %vm720, %v812, 0.0
    %v843 = vadd.f32 %v841, %v842
    %v844 = vrot.slane %v843, 4
    %v845 = vadd.f32 %v843, %v844
    %v846 = vrot.slane %v845, 2
    %v847 = vadd.f32 %v845, %v846
    %v848 = vrot.slane %v847, 1
    %v849 = vadd.f32 %v847, %v848
    %v850 = vsel %vm720, %v814, 0.0
    %v851 = vsel %vm720, %v816, 0.0
    %v852 = vadd.f32 %v850, %v851
    %v853 = vrot.slane %v852, 4
    %v854 = vadd.f32 %v852, %v853
    %v855 = vrot.slane %v854, 2
    %v856 = vadd.f32 %v854, %v855
    %v857 = vrot.slane %v856, 1
    %v858 = vadd.f32 %v856, %v857
    %v859 = vsel %vm720, %v818, 0.0
    %v860 = vsel %vm720, %v820, 0.0
    %v861 = vadd.f32 %v859, %v860
    %v862 = vrot.slane %v861, 4
    %v863 = vadd.f32 %v861, %v862
    %v864 = vrot.slane %v863, 2
    %v865 = vadd.f32 %v863, %v864
    %v866 = vrot.slane %v865, 1
    %v867 = vadd.f32 %v865, %v866
    %v868 = vsel %vm720, %v822, 0.0
    %v869 = vsel %vm720, %v824, 0.0
    %v870 = vadd.f32 %v868, %v869
    %v871 = vrot.slane %v870, 4
    %v872 = vadd.f32 %v870, %v871
    %v873 = vrot.slane %v872, 2
    %v874 = vadd.f32 %v872, %v873
    %v875 = vrot.slane %v874, 1
    %v876 = vadd.f32 %v874, %v875
    %v877 = vsel %vm720, %v826, 0.0
    %v878 = vsel %vm720, %v828, 0.0
    %v879 = vadd.f32 %v877, %v878
    %v880 = vrot.slane %v879, 4
    %v881 = vadd.f32 %v879, %v880
    %v882 = vrot.slane %v881, 2
    %v883 = vadd.f32 %v881, %v882
    %v884 = vrot.slane %v883, 1
    %v885 = vadd.f32 %v883, %v884
    %v886 = vsel %vm720, %v830, 0.0
    %v887 = vsel %vm720, %v832, 0.0
    %v888 = vadd.f32 %v886, %v887
    %v889 = vrot.slane %v888, 4
    %v890 = vadd.f32 %v888, %v889
    %v891 = vrot.slane %v890, 2
    %v892 = vadd.f32 %v890, %v891
    %v893 = vrot.slane %v892, 1
    %v894 = vadd.f32 %v892, %v893
    %v895 = vsel %vm720, %v834, 0.0
    %v896 = vsel %vm720, %v836, 0.0
    %v897 = vadd.f32 %v895, %v896
    %v898 = vrot.slane %v897, 4
    %v899 = vadd.f32 %v897, %v898
    %v900 = vrot.slane %v899, 2
    %v901 = vadd.f32 %v899, %v900
    %v902 = vrot.slane %v901, 1
    %v903 = vadd.f32 %v901, %v902
    %v904 = vsel %vm720, %v838, 0.0
    %v905 = vsel %vm720, %v840, 0.0
    %v906 = vadd.f32 %v904, %v905
    %v907 = vrot.slane %v906, 4
    %v908 = vadd.f32 %v906, %v907
    %v909 = vrot.slane %v908, 2
    %v910 = vadd.f32 %v908, %v909
    %v911 = vrot.slane %v910, 1
    %v912 = vadd.f32 %v910, %v911
    %v913 = vlog2.pop %v849
    %v914 = vmul.f32 %v913, 0.6931472
    %v915 = vlog2.pop %v858
    %v916 = vmul.f32 %v915, 0.6931472
    %v917 = vlog2.pop %v867
    %v918 = vmul.f32 %v917, 0.6931472
    %v919 = vlog2.pop %v876
    %v920 = vmul.f32 %v919, 0.6931472
    %v921 = vlog2.pop %v885
    %v922 = vmul.f32 %v921, 0.6931472
    %v923 = vlog2.pop %v894
    %v924 = vmul.f32 %v923, 0.6931472
    %v925 = vlog2.pop %v903
    %v926 = vmul.f32 %v925, 0.6931472
    %v927 = vlog2.pop %v912
    %v928 = vmul.f32 %v927, 0.6931472
    %v929 = vsub.f32 %v793, %v914
    %v930 = vsub.f32 %v794, %v914
    %v931 = vsub.f32 %v795, %v916
    %v932 = vsub.f32 %v796, %v916
    %v933 = vsub.f32 %v797, %v918
    %v934 = vsub.f32 %v798, %v918
    %v935 = vsub.f32 %v799, %v920
    %v936 = vsub.f32 %v800, %v920
    %v937 = vsub.f32 %v801, %v922
    %v938 = vsub.f32 %v802, %v922
    %v939 = vsub.f32 %v803, %v924
    %v940 = vsub.f32 %v804, %v924
    %v941 = vsub.f32 %v805, %v926
    %v942 = vsub.f32 %v806, %v926
    %v943 = vsub.f32 %v807, %v928
    %v944 = vsub.f32 %v808, %v928
    %945 = vst.msk [vmem:[%s4] sm:$0xff] %vm720, %v929
    %946 = vst.msk [vmem:[%s4 + $0x8] sm:$0xff] %vm720, %v930
    %947 = vst.msk [vmem:[%s4 + $0x10] sm:$0xff] %vm720, %v931
    %948 = vst.msk [vmem:[%s4 + $0x18] sm:$0xff] %vm720, %v932
    %949 = vst.msk [vmem:[%s4 + $0x20] sm:$0xff] %vm720, %v933
    %950 = vst.msk [vmem:[%s4 + $0x28] sm:$0xff] %vm720, %v934
    %951 = vst.msk [vmem:[%s4 + $0x30] sm:$0xff] %vm720, %v935
    %952 = vst.msk [vmem:[%s4 + $0x38] sm:$0xff] %vm720, %v936
    %953 = vst.msk [vmem:[%s4 + $0x40] sm:$0xff] %vm720, %v937
    %954 = vst.msk [vmem:[%s4 + $0x48] sm:$0xff] %vm720, %v938
    %955 = vst.msk [vmem:[%s4 + $0x50] sm:$0xff] %vm720, %v939
    %956 = vst.msk [vmem:[%s4 + $0x58] sm:$0xff] %vm720, %v940
    %957 = vst.msk [vmem:[%s4 + $0x60] sm:$0xff] %vm720, %v941
    %958 = vst.msk [vmem:[%s4 + $0x68] sm:$0xff] %vm720, %v942
    %959 = vst.msk [vmem:[%s4 + $0x70] sm:$0xff] %vm720, %v943
    %960 = vst.msk [vmem:[%s4 + $0x78] sm:$0xff] %vm720, %v944
    // Predicated region
    $region14: #{_forward_jit.1} parent=1 // pred_check
      _
    $region15: #{_forward_jit.1} parent=1 // pred_check_branch
      %962 = sbr.rel (0) target = $region17
    $region16: #{_forward_jit.1} parent=1 // pred_region
      %s964 = ssub.s32 128, 128
      %965 = vsyncadd [#allocation3], %s964
      %s967 = sshll.u32 [#allocation2], 4
      %s968 = int_to_ptr.vmem [resolvable:$true] %s967
      %970 = dma.vmem_to_hbm [thread:$0]  %s968, 128, %s3, [#allocation3]
    $region17: #{_forward_jit.1} parent=1 // pred_fallthru
      _
    // Predicated region
    $region18: #{_forward_jit.1} parent=1 // pred_check
      _
    $region19: #{_forward_jit.1} parent=1 // pred_check_branch
      %972 = sbr.rel (0) target = $region21
    $region20: #{_forward_jit.1} parent=1 // pred_region
      _
    $region21: #{_forward_jit.1} parent=1 // pred_fallthru
      _
    // Predicated region
    $region22: #{_forward_jit.1} parent=1 // pred_check
      _
    $region23: #{_forward_jit.1} parent=1 // pred_check_branch
      %974 = sbr.rel (0) target = $region25
    $region24: #{_forward_jit.1} parent=1 // pred_region
      %975 = dma.done [#allocation3], 128
    $region25: #{_forward_jit.1} parent=1 // pred_fallthru
      _
    // Predicated region
    $region26: #{_forward_jit.1} parent=1 // pred_check
      _
    $region27: #{_forward_jit.1} parent=1 // pred_check_branch
      %977 = sbr.rel (0) target = $region29
    $region28: #{_forward_jit.1} parent=1 // pred_region
      _
    $region29: #{_forward_jit.1} parent=1 // pred_fallthru
      _
    %978 = vsyncpa [#allocation3], 1

</llo_original>
